<compile_context>
chip_gen: v7x
topology: tpu7x:2x2x1
jax: 0.10.0
libtpu: 0.0.40
codegen_flags: <defaults>
</compile_context>

<pallas_src>
from math import sqrt
import functools

import numpy as np
import jax
import jax.numpy as jnp
from jax import lax
from jax.experimental import pallas as pl
from jax.experimental.pallas import tpu as pltpu


def _rel_mha_kernel(xs_ref, w_ref, rel_ref, out_ref, *,
                    heads_per_group, key_dim, value_dim, scale, compute_dtype):
    Hg, K, V = heads_per_group, key_dim, value_dim
    cdt = compute_dtype

    x = xs_ref[...]                  # (S, E)                       compute_dtype
    w = w_ref[...]                   # (E, Hg*(3K+V))               compute_dtype (this head group)
    rel_t = rel_ref[...]             # (K, Wpad)                    compute_dtype, VMEM-resident
    S = x.shape[0]

    oq, ok, opq, ov = 0, Hg * K, 2 * Hg * K, 3 * Hg * K

    # One projection matmul for the whole head group: [q | k | pos-q | (w_o-scaled) v].
    proj = jnp.dot(x, w, preferred_element_type=jnp.float32)                 # (S, Hg*(3K+V)) f32

    # Relative scores for all heads of the group in ONE MXU matmul (stacked rows feed more MXU rows):
    #   a_stack[j*S + i, r] = pq_j[i, :] . a_k[pos_vec[r], :]
    pq_stack = jnp.concatenate(
        [proj[:, opq + j * K: opq + (j + 1) * K] for j in range(Hg)], axis=0)    # (Hg*S, K)
    a_stack = jnp.dot(pq_stack.astype(cdt), rel_t,
                      preferred_element_type=jnp.float32)                        # (Hg*S, Wpad)

    ctx = []
    for j in range(Hg):                                   # unrolled at trace time (Hg is small)
        q = proj[:, oq + j * K: oq + (j + 1) * K].astype(cdt)     # (S, K)
        k = proj[:, ok + j * K: ok + (j + 1) * K].astype(cdt)     # (S, K)
        v = proj[:, ov + j * V: ov + (j + 1) * V].astype(cdt)     # (S, V)  already * w_o[h]

        # Content scores on the MXU.
        qk = lax.dot_general(q, k, (((1,), (1,)), ((), ())),
                             preferred_element_type=jnp.float32)                 # (S, S)

        # Skew: qrel[i, jj] = a_j[i, S-1 + jj - i].  All slice starts are static Python ints,
        # so this lowers to lane shifts + a concatenate (no gather needed at this scale).
        a_j = a_stack[j * S:(j + 1) * S]                                          # (S, Wpad)
        qrel = jnp.concatenate(
            [a_j[i:i + 1, S - 1 - i: 2 * S - 1 - i] for i in range(S)], axis=0)   # (S, S)

        # Softmax in f32 (v5e VPU/EUP have no bf16 path).
        e = (qk + qrel) * scale
        e = e - jnp.max(e, axis=-1, keepdims=True)
        p = jnp.exp(e)
        denom = jnp.sum(p, axis=-1, keepdims=True)
        r = pl.reciprocal(denom, approx=True)             # EUP slot (otherwise idle)
        r = r * (2.0 - denom * r)                         # one Newton step -> f32-tight
        alphas = (p * r).astype(cdt)

        ctx.append(jnp.dot(alphas, v, preferred_element_type=jnp.float32))        # (S, V)

    # Lane-dense (S, Hg*V) = (S, 128) unmasked store; the w_o-weighted head-sum is a trivial
    # reduction done in the wrapper.
    out_ref[...] = jnp.concatenate(ctx, axis=1).astype(out_ref.dtype)


def efficient_relative_mha(xs, w_q, w_k, w_v, w_o, a_q, a_k, *, relative_cutoff,
                           compute_dtype=jnp.float32, heads_per_group=2):
    """xs: (B, S, E) f32.  Returns (B, S, value_dim) f32, matching the PyTorch forward."""
    B, S, E = xs.shape
    H, _, K = w_q.shape
    V = w_v.shape[2]
    Hg = min(heads_per_group, H)
    assert H % Hg == 0, "n_heads must be divisible by heads_per_group"
    n_groups = H // Hg
    Wg = Hg * (3 * K + V)

    # ---- pure-JAX glue (outside the hot loop) -------------------------------------------------
    w_v_scaled = w_v * w_o[:, None, None]            # fold w_o into the value projection

    def stack_group(wh):                             # (Hg, E, D) -> (E, Hg*D), head-minor blocks
        return jnp.transpose(wh, (1, 0, 2)).reshape(E, -1)

    blocks = []
    for g in range(n_groups):
        sl = slice(g * Hg, (g + 1) * Hg)
        blocks.append(jnp.concatenate(
            [stack_group(w_q[sl]), stack_group(w_k[sl]),
             stack_group(a_q[sl]), stack_group(w_v_scaled[sl])], axis=1))
    w_big = jnp.concatenate(blocks, axis=1)          # (E, n_groups * Wg)

    # Compact gathered relative table (replaces the old (S, S, K) slab):
    #   rel_t[:, r] = a_k[clip(r - (S-1), -c, c) + c, :]   for r < 2S-1, zero-padded to 128 lanes.
    pos_vec = jnp.clip(jnp.arange(-S + 1, S), -relative_cutoff, relative_cutoff) + relative_cutoff
    rel = a_k[pos_vec]                               # (2S-1, K)
    w_pad = max(128, ((2 * S - 1 + 127) // 128) * 128)
    rel_t = jnp.pad(rel.T, ((0, 0), (0, w_pad - (2 * S - 1))))       # (K, Wpad)

    xs_in = xs.astype(compute_dtype)
    w_in = w_big.astype(compute_dtype)
    rel_in = rel_t.astype(compute_dtype)

    kernel = functools.partial(_rel_mha_kernel, heads_per_group=Hg, key_dim=K, value_dim=V,
                               scale=1.0 / sqrt(V), compute_dtype=compute_dtype)

    # Explicit VMEM budget from the chosen block sizes (double buffers + temporary headroom).
    esize = jnp.dtype(compute_dtype).itemsize
    block_bytes = S * E * esize + E * Wg * esize + K * w_pad * esize + S * Hg * V * 4
    vmem_limit = int(min(48 << 20, max(16 << 20, 4 * block_bytes + (4 << 20))))

    out_phv = pl.pallas_call(
        kernel,
        out_shape=jax.ShapeDtypeStruct((B, S, H * V), jnp.float32),
        grid_spec=pltpu.PrefetchScalarGridSpec(
            num_scalar_prefetch=0,
            grid=(B, n_groups),
            in_specs=[
                pl.BlockSpec((None, S, E), lambda b, g: (b, 0, 0)),   # xs row: resident across g
                pl.BlockSpec((E, Wg), lambda b, g: (0, g)),           # this group's stacked weights
                pl.BlockSpec((K, w_pad), lambda b, g: (0, 0)),        # rel table: VMEM-resident
            ],
            out_specs=pl.BlockSpec((None, S, Hg * V), lambda b, g: (b, 0, g)),
        ),
        compiler_params=pltpu.CompilerParams(
            dimension_semantics=("parallel", "parallel"),
            vmem_limit_bytes=vmem_limit),
    )(xs_in, w_in, rel_in)

    # Cheap head reduction (values were already scaled by w_o inside the kernel).
    return out_phv.reshape(B, S, H, V).sum(axis=2)


# ---------------------------- pure-JAX reference (mirrors the PyTorch module) -------------------
def _skew_matrix(m):
    B, H, S, _ = m.shape
    m = jnp.pad(m, ((0, 0), (0, 0), (0, 0), (0, 1)))
    m = m.reshape(B, H, S * 2 * S)
    m = jnp.pad(m, ((0, 0), (0, 0), (0, S - 1)))
    m = m.reshape(B, H, S + 1, 2 * S - 1)
    return m[:, :, :S, (2 * S - 1) - S:]


def reference(xs, w_q, w_k, w_v, w_o, a_q, a_k, *, relative_cutoff, value_dim):
    S = xs.shape[1]
    queries = jnp.einsum('bse,heq->bhsq', xs, w_q)
    keys = jnp.einsum('bse,hek->bhsk', xs, w_k)
    values = jnp.einsum('bse,hev->bhsv', xs, w_v)
    q_k = jnp.einsum('bhiq,bhjq->bhij', queries, keys)
    positional_queries = jnp.einsum('bse,heq->bhsq', xs, a_q)
    pos_vec = jnp.clip(jnp.arange(-S + 1, S), -relative_cutoff, relative_cutoff) + relative_cutoff
    rel = a_k[pos_vec]
    q_rel = jnp.einsum('bhiq,rq->bhir', positional_queries, rel)
    q_rel = _skew_matrix(q_rel)
    e = (q_k + q_rel) / sqrt(value_dim)
    alphas = jax.nn.softmax(e, axis=3)
    qkv = jnp.einsum('bhij,bhjv->bhiv', alphas, values)
    return jnp.einsum('bhsv,h->bsv', qkv, w_o)


if __name__ == "__main__":
    embed_dim = 32
    key_dim = 64
    value_dim = 64
    n_heads = 8
    relative_cutoff = 128
    B, S = 2, 16

    key = jax.random.PRNGKey(0)
    k_x, k_wq, k_wk, k_wv, k_wo, k_aq, k_ak = jax.random.split(key, 7)

    b_w = 1.0 / sqrt(embed_dim * key_dim)
    b_ak = 1.0 / sqrt(key_dim)
    w_q = jax.random.uniform(k_wq, (n_heads, embed_dim, key_dim), jnp.float32, -b_w, b_w)
    w_k = jax.random.uniform(k_wk, (n_heads, embed_dim, key_dim), jnp.float32, -b_w, b_w)
    w_v = jax.random.uniform(k_wv, (n_heads, embed_dim, value_dim), jnp.float32, -b_w, b_w)
    a_q = jax.random.uniform(k_aq, (n_heads, embed_dim, key_dim), jnp.float32, -b_w, b_w)
    a_k = jax.random.uniform(k_ak, (2 * relative_cutoff + 1, key_dim), jnp.float32, -b_ak, b_ak)
    # Module init is ones_; use a non-trivial deterministic w_o so the w_o->w_v folding is tested.
    w_o = jax.random.uniform(k_wo, (n_heads,), jnp.float32, 0.5, 1.5)
    # (the module's a_v parameter is unused by forward(); omitted here)

    xs = jax.random.normal(k_x, (B, S, embed_dim), jnp.float32)

    ref = reference(xs, w_q, w_k, w_v, w_o, a_q, a_k,
                    relative_cutoff=relative_cutoff, value_dim=value_dim)

    # f32 MXU path (tight tolerance).
    out_f32 = efficient_relative_mha(xs, w_q, w_k, w_v, w_o, a_q, a_k,
                                     relative_cutoff=relative_cutoff,
                                     compute_dtype=jnp.float32)
    out_f32 = jax.block_until_ready(out_f32)
    np.testing.assert_allclose(np.asarray(out_f32), np.asarray(ref), rtol=2e-4, atol=1e-5)
    assert out_f32.shape == (B, S, value_dim)

    # bf16 MXU-operand path (the recommended setting on v6e/v7x) with a dtype-aware tolerance.
    out_bf16 = efficient_relative_mha(xs, w_q, w_k, w_v, w_o, a_q, a_k,
                                      relative_cutoff=relative_cutoff,
                                      compute_dtype=jnp.bfloat16)
    out_bf16 = jax.block_until_ready(out_bf16)
    np.testing.assert_allclose(np.asarray(out_bf16), np.asarray(ref), rtol=5e-2, atol=5e-2)

    print("KERNEL_OK")
</pallas_src>

<mosaic_0001>
module attributes {stable_mosaic.version = 11 : i64} {
  func.func @_rel_mha_kernel(%arg0: i32, %arg1: i32, %arg2: memref<1x16x32xf32, #tpu.memory_space<vmem>>, %arg3: memref<32x512xf32, #tpu.memory_space<vmem>>, %arg4: memref<64x128xf32, #tpu.memory_space<vmem>>, %arg5: memref<1x16x128xf32, #tpu.memory_space<vmem>>) attributes {dimension_semantics = [#tpu.dimension_semantics<parallel>, #tpu.dimension_semantics<parallel>], iteration_bounds = array<i64: 2, 4>, scalar_prefetch = 0 : i64, scratch_operands = 0 : i64, tpu.core_type = #tpu.core_type<tc>, window_params = [{transform_indices = @transform_0, window_bounds = array<i64: 1, 16, 32>}, {transform_indices = @transform_1, window_bounds = array<i64: 32, 512>}, {pipeline_mode = #tpu.pipeline_mode<synchronous>, transform_indices = @transform_2, window_bounds = array<i64: 64, 128>}, {transform_indices = @transform_3, window_bounds = array<i64: 1, 16, 128>}]} {
    %c0 = arith.constant 0 : index
    %c0_0 = arith.constant 0 : index
    %c0_1 = arith.constant 0 : index
    %0 = vector.load %arg2[%c0, %c0_0, %c0_1] : memref<1x16x32xf32, #tpu.memory_space<vmem>>, vector<1x16x32xf32>
    %1 = vector.shape_cast %0 : vector<1x16x32xf32> to vector<16x32xf32>
    %c0_2 = arith.constant 0 : index
    %c0_3 = arith.constant 0 : index
    %2 = vector.load %arg3[%c0_2, %c0_3] : memref<32x512xf32, #tpu.memory_space<vmem>>, vector<32x512xf32>
    %c0_4 = arith.constant 0 : index
    %c0_5 = arith.constant 0 : index
    %3 = vector.load %arg4[%c0_4, %c0_5] : memref<64x128xf32, #tpu.memory_space<vmem>>, vector<64x128xf32>
    %cst = arith.constant dense<0.000000e+00> : vector<16x512xf32>
    %4 = tpu.matmul %1, %2, %cst {dimension_numbers = #tpu.dot_dimension_numbers<[1], [0], [0], [1], [0, 0, 1, 1], [], []>} : vector<16x32xf32>, vector<32x512xf32>, vector<16x512xf32> -> vector<16x512xf32>
    %5 = vector.extract_strided_slice %4 {offsets = [0, 256], sizes = [16, 64], strides = [1, 1]} : vector<16x512xf32> to vector<16x64xf32>
    %6 = vector.extract_strided_slice %4 {offsets = [0, 320], sizes = [16, 64], strides = [1, 1]} : vector<16x512xf32> to vector<16x64xf32>
    %7 = tpu.concatenate %5, %6 in 0 : vector<16x64xf32>, vector<16x64xf32> -> vector<32x64xf32>
    %cst_6 = arith.constant dense<0.000000e+00> : vector<32x128xf32>
    %8 = tpu.matmul %7, %3, %cst_6 {dimension_numbers = #tpu.dot_dimension_numbers<[1], [0], [0], [1], [0, 0, 1, 1], [], []>} : vector<32x64xf32>, vector<64x128xf32>, vector<32x128xf32> -> vector<32x128xf32>
    %9 = vector.extract_strided_slice %4 {offsets = [0, 0], sizes = [16, 64], strides = [1, 1]} : vector<16x512xf32> to vector<16x64xf32>
    %10 = vector.extract_strided_slice %4 {offsets = [0, 128], sizes = [16, 64], strides = [1, 1]} : vector<16x512xf32> to vector<16x64xf32>
    %11 = vector.extract_strided_slice %4 {offsets = [0, 384], sizes = [16, 64], strides = [1, 1]} : vector<16x512xf32> to vector<16x64xf32>
    %cst_7 = arith.constant dense<0.000000e+00> : vector<16x16xf32>
    %12 = tpu.matmul %9, %10, %cst_7 {dimension_numbers = #tpu.dot_dimension_numbers<[1], [1], [0], [0], [0, 0, 1, 0], [], []>} : vector<16x64xf32>, vector<16x64xf32>, vector<16x16xf32> -> vector<16x16xf32>
    %13 = vector.extract_strided_slice %8 {offsets = [0, 0], sizes = [16, 128], strides = [1, 1]} : vector<32x128xf32> to vector<16x128xf32>
    %14 = vector.extract_strided_slice %13 {offsets = [0, 15], sizes = [1, 16], strides = [1, 1]} : vector<16x128xf32> to vector<1x16xf32>
    %15 = vector.extract_strided_slice %13 {offsets = [1, 14], sizes = [1, 16], strides = [1, 1]} : vector<16x128xf32> to vector<1x16xf32>
    %16 = vector.extract_strided_slice %13 {offsets = [2, 13], sizes = [1, 16], strides = [1, 1]} : vector<16x128xf32> to vector<1x16xf32>
    %17 = vector.extract_strided_slice %13 {offsets = [3, 12], sizes = [1, 16], strides = [1, 1]} : vector<16x128xf32> to vector<1x16xf32>
    %18 = vector.extract_strided_slice %13 {offsets = [4, 11], sizes = [1, 16], strides = [1, 1]} : vector<16x128xf32> to vector<1x16xf32>
    %19 = vector.extract_strided_slice %13 {offsets = [5, 10], sizes = [1, 16], strides = [1, 1]} : vector<16x128xf32> to vector<1x16xf32>
    %20 = vector.extract_strided_slice %13 {offsets = [6, 9], sizes = [1, 16], strides = [1, 1]} : vector<16x128xf32> to vector<1x16xf32>
    %21 = vector.extract_strided_slice %13 {offsets = [7, 8], sizes = [1, 16], strides = [1, 1]} : vector<16x128xf32> to vector<1x16xf32>
    %22 = vector.extract_strided_slice %13 {offsets = [8, 7], sizes = [1, 16], strides = [1, 1]} : vector<16x128xf32> to vector<1x16xf32>
    %23 = vector.extract_strided_slice %13 {offsets = [9, 6], sizes = [1, 16], strides = [1, 1]} : vector<16x128xf32> to vector<1x16xf32>
    %24 = vector.extract_strided_slice %13 {offsets = [10, 5], sizes = [1, 16], strides = [1, 1]} : vector<16x128xf32> to vector<1x16xf32>
    %25 = vector.extract_strided_slice %13 {offsets = [11, 4], sizes = [1, 16], strides = [1, 1]} : vector<16x128xf32> to vector<1x16xf32>
    %26 = vector.extract_strided_slice %13 {offsets = [12, 3], sizes = [1, 16], strides = [1, 1]} : vector<16x128xf32> to vector<1x16xf32>
    %27 = vector.extract_strided_slice %13 {offsets = [13, 2], sizes = [1, 16], strides = [1, 1]} : vector<16x128xf32> to vector<1x16xf32>
    %28 = vector.extract_strided_slice %13 {offsets = [14, 1], sizes = [1, 16], strides = [1, 1]} : vector<16x128xf32> to vector<1x16xf32>
    %29 = vector.extract_strided_slice %13 {offsets = [15, 0], sizes = [1, 16], strides = [1, 1]} : vector<16x128xf32> to vector<1x16xf32>
    %30 = tpu.concatenate %14, %15, %16, %17, %18, %19, %20, %21, %22, %23, %24, %25, %26, %27, %28, %29 in 0 : vector<1x16xf32>, vector<1x16xf32>, vector<1x16xf32>, vector<1x16xf32>, vector<1x16xf32>, vector<1x16xf32>, vector<1x16xf32>, vector<1x16xf32>, vector<1x16xf32>, vector<1x16xf32>, vector<1x16xf32>, vector<1x16xf32>, vector<1x16xf32>, vector<1x16xf32>, vector<1x16xf32>, vector<1x16xf32> -> vector<16x16xf32>
    %31 = arith.addf %12, %30 : vector<16x16xf32>
    %cst_8 = arith.constant 1.250000e-01 : f32
    %32 = vector.broadcast %cst_8 : f32 to vector<16x16xf32>
    %33 = arith.mulf %31, %32 : vector<16x16xf32>
    %cst_9 = arith.constant dense<0xFF800000> : vector<16xf32>
    %34 = vector.multi_reduction <maximumf>, %33, %cst_9 [1] : vector<16x16xf32> to vector<16xf32>
    %35 = vector.shape_cast %34 : vector<16xf32> to vector<16x1xf32>
    %36 = vector.broadcast %35 : vector<16x1xf32> to vector<16x16xf32>
    %37 = arith.subf %33, %36 : vector<16x16xf32>
    %38 = math.exp %37 : vector<16x16xf32>
    %cst_10 = arith.constant dense<0.000000e+00> : vector<16xf32>
    %39 = vector.multi_reduction <add>, %38, %cst_10 [1] : vector<16x16xf32> to vector<16xf32>
    %40 = vector.shape_cast %39 : vector<16xf32> to vector<16x1xf32>
    %41 = tpu.reciprocal %40 {approx = true} : vector<16x1xf32> -> vector<16x1xf32>
    %42 = arith.mulf %40, %41 : vector<16x1xf32>
    %cst_11 = arith.constant 2.000000e+00 : f32
    %43 = vector.broadcast %cst_11 : f32 to vector<16x1xf32>
    %44 = arith.subf %43, %42 : vector<16x1xf32>
    %45 = arith.mulf %41, %44 : vector<16x1xf32>
    %46 = vector.broadcast %45 : vector<16x1xf32> to vector<16x16xf32>
    %47 = arith.mulf %38, %46 : vector<16x16xf32>
    %cst_12 = arith.constant dense<0.000000e+00> : vector<16x64xf32>
    %48 = tpu.matmul %47, %11, %cst_12 {dimension_numbers = #tpu.dot_dimension_numbers<[1], [0], [0], [1], [0, 0, 1, 1], [], []>} : vector<16x16xf32>, vector<16x64xf32>, vector<16x64xf32> -> vector<16x64xf32>
    %49 = vector.extract_strided_slice %4 {offsets = [0, 64], sizes = [16, 64], strides = [1, 1]} : vector<16x512xf32> to vector<16x64xf32>
    %50 = vector.extract_strided_slice %4 {offsets = [0, 192], sizes = [16, 64], strides = [1, 1]} : vector<16x512xf32> to vector<16x64xf32>
    %51 = vector.extract_strided_slice %4 {offsets = [0, 448], sizes = [16, 64], strides = [1, 1]} : vector<16x512xf32> to vector<16x64xf32>
    %cst_13 = arith.constant dense<0.000000e+00> : vector<16x16xf32>
    %52 = tpu.matmul %49, %50, %cst_13 {dimension_numbers = #tpu.dot_dimension_numbers<[1], [1], [0], [0], [0, 0, 1, 0], [], []>} : vector<16x64xf32>, vector<16x64xf32>, vector<16x16xf32> -> vector<16x16xf32>
    %53 = vector.extract_strided_slice %8 {offsets = [16, 0], sizes = [16, 128], strides = [1, 1]} : vector<32x128xf32> to vector<16x128xf32>
    %54 = vector.extract_strided_slice %53 {offsets = [0, 15], sizes = [1, 16], strides = [1, 1]} : vector<16x128xf32> to vector<1x16xf32>
    %55 = vector.extract_strided_slice %53 {offsets = [1, 14], sizes = [1, 16], strides = [1, 1]} : vector<16x128xf32> to vector<1x16xf32>
    %56 = vector.extract_strided_slice %53 {offsets = [2, 13], sizes = [1, 16], strides = [1, 1]} : vector<16x128xf32> to vector<1x16xf32>
    %57 = vector.extract_strided_slice %53 {offsets = [3, 12], sizes = [1, 16], strides = [1, 1]} : vector<16x128xf32> to vector<1x16xf32>
    %58 = vector.extract_strided_slice %53 {offsets = [4, 11], sizes = [1, 16], strides = [1, 1]} : vector<16x128xf32> to vector<1x16xf32>
    %59 = vector.extract_strided_slice %53 {offsets = [5, 10], sizes = [1, 16], strides = [1, 1]} : vector<16x128xf32> to vector<1x16xf32>
    %60 = vector.extract_strided_slice %53 {offsets = [6, 9], sizes = [1, 16], strides = [1, 1]} : vector<16x128xf32> to vector<1x16xf32>
    %61 = vector.extract_strided_slice %53 {offsets = [7, 8], sizes = [1, 16], strides = [1, 1]} : vector<16x128xf32> to vector<1x16xf32>
    %62 = vector.extract_strided_slice %53 {offsets = [8, 7], sizes = [1, 16], strides = [1, 1]} : vector<16x128xf32> to vector<1x16xf32>
    %63 = vector.extract_strided_slice %53 {offsets = [9, 6], sizes = [1, 16], strides = [1, 1]} : vector<16x128xf32> to vector<1x16xf32>
    %64 = vector.extract_strided_slice %53 {offsets = [10, 5], sizes = [1, 16], strides = [1, 1]} : vector<16x128xf32> to vector<1x16xf32>
    %65 = vector.extract_strided_slice %53 {offsets = [11, 4], sizes = [1, 16], strides = [1, 1]} : vector<16x128xf32> to vector<1x16xf32>
    %66 = vector.extract_strided_slice %53 {offsets = [12, 3], sizes = [1, 16], strides = [1, 1]} : vector<16x128xf32> to vector<1x16xf32>
    %67 = vector.extract_strided_slice %53 {offsets = [13, 2], sizes = [1, 16], strides = [1, 1]} : vector<16x128xf32> to vector<1x16xf32>
    %68 = vector.extract_strided_slice %53 {offsets = [14, 1], sizes = [1, 16], strides = [1, 1]} : vector<16x128xf32> to vector<1x16xf32>
    %69 = vector.extract_strided_slice %53 {offsets = [15, 0], sizes = [1, 16], strides = [1, 1]} : vector<16x128xf32> to vector<1x16xf32>
    %70 = tpu.concatenate %54, %55, %56, %57, %58, %59, %60, %61, %62, %63, %64, %65, %66, %67, %68, %69 in 0 : vector<1x16xf32>, vector<1x16xf32>, vector<1x16xf32>, vector<1x16xf32>, vector<1x16xf32>, vector<1x16xf32>, vector<1x16xf32>, vector<1x16xf32>, vector<1x16xf32>, vector<1x16xf32>, vector<1x16xf32>, vector<1x16xf32>, vector<1x16xf32>, vector<1x16xf32>, vector<1x16xf32>, vector<1x16xf32> -> vector<16x16xf32>
    %71 = arith.addf %52, %70 : vector<16x16xf32>
    %cst_14 = arith.constant 1.250000e-01 : f32
    %72 = vector.broadcast %cst_14 : f32 to vector<16x16xf32>
    %73 = arith.mulf %71, %72 : vector<16x16xf32>
    %cst_15 = arith.constant dense<0xFF800000> : vector<16xf32>
    %74 = vector.multi_reduction <maximumf>, %73, %cst_15 [1] : vector<16x16xf32> to vector<16xf32>
    %75 = vector.shape_cast %74 : vector<16xf32> to vector<16x1xf32>
    %76 = vector.broadcast %75 : vector<16x1xf32> to vector<16x16xf32>
    %77 = arith.subf %73, %76 : vector<16x16xf32>
    %78 = math.exp %77 : vector<16x16xf32>
    %cst_16 = arith.constant dense<0.000000e+00> : vector<16xf32>
    %79 = vector.multi_reduction <add>, %78, %cst_16 [1] : vector<16x16xf32> to vector<16xf32>
    %80 = vector.shape_cast %79 : vector<16xf32> to vector<16x1xf32>
    %81 = tpu.reciprocal %80 {approx = true} : vector<16x1xf32> -> vector<16x1xf32>
    %82 = arith.mulf %80, %81 : vector<16x1xf32>
    %cst_17 = arith.constant 2.000000e+00 : f32
    %83 = vector.broadcast %cst_17 : f32 to vector<16x1xf32>
    %84 = arith.subf %83, %82 : vector<16x1xf32>
    %85 = arith.mulf %81, %84 : vector<16x1xf32>
    %86 = vector.broadcast %85 : vector<16x1xf32> to vector<16x16xf32>
    %87 = arith.mulf %78, %86 : vector<16x16xf32>
    %cst_18 = arith.constant dense<0.000000e+00> : vector<16x64xf32>
    %88 = tpu.matmul %87, %51, %cst_18 {dimension_numbers = #tpu.dot_dimension_numbers<[1], [0], [0], [1], [0, 0, 1, 1], [], []>} : vector<16x16xf32>, vector<16x64xf32>, vector<16x64xf32> -> vector<16x64xf32>
    %89 = tpu.concatenate %48, %88 in 1 : vector<16x64xf32>, vector<16x64xf32> -> vector<16x128xf32>
    %c0_19 = arith.constant 0 : index
    %c0_20 = arith.constant 0 : index
    %c0_21 = arith.constant 0 : index
    %90 = vector.load %arg5[%c0_19, %c0_20, %c0_21] : memref<1x16x128xf32, #tpu.memory_space<vmem>>, vector<1x16x128xf32>
    %91 = vector.shape_cast %90 : vector<1x16x128xf32> to vector<16x128xf32>
    %92 = vector.shape_cast %89 : vector<16x128xf32> to vector<1x16x128xf32>
    tpu.vector_store %arg5[%c0_19, %c0_20, %c0_21], %92 {strides = array<i32>} : memref<1x16x128xf32, #tpu.memory_space<vmem>>, vector<1x16x128xf32>,
    return
  }
  func.func @transform_0(%arg0: i32, %arg1: i32) -> (i32, i32, i32) {
    %c0_i32 = arith.constant 0 : i32
    %c0_i32_0 = arith.constant 0 : i32
    %c0_i32_1 = arith.constant 0 : i32
    return %arg0, %c0_i32, %c0_i32_0 : i32, i32, i32
  }
  func.func @transform_1(%arg0: i32, %arg1: i32) -> (i32, i32) {
    %c0_i32 = arith.constant 0 : i32
    %c0_i32_0 = arith.constant 0 : i32
    return %c0_i32, %arg1 : i32, i32
  }
  func.func @transform_2(%arg0: i32, %arg1: i32) -> (i32, i32) {
    %c0_i32 = arith.constant 0 : i32
    %c0_i32_0 = arith.constant 0 : i32
    %c0_i32_1 = arith.constant 0 : i32
    return %c0_i32, %c0_i32_0 : i32, i32
  }
  func.func @transform_3(%arg0: i32, %arg1: i32) -> (i32, i32, i32) {
    %c0_i32 = arith.constant 0 : i32
    %c0_i32_0 = arith.constant 0 : i32
    return %arg0, %c0_i32, %arg1 : i32, i32, i32
  }
}

</mosaic_0001>

<llo_original>
// kernel: tpu_custom_call.1
$region0: #{tpu_custom_call.1}
  #allocation0 [shape = 'u32[]', space=smem, size = 0x4, offset = 0x4, fixed_abs, tag = 'smem constant byte address 0x4 - core index']
  #allocation1 [shape = 'u32[144,128]{1,0:T(1,128)}', space=vmem, size = 0x12000, scoped, tag = 'internal scratch']
  %s0 = inlined_call_operand.hbm [shape: f32[2,16,32], index: 0, kind: input, shape index: {}]
  %s1 = inlined_call_operand.hbm [shape: f32[32,2048], index: 1, kind: input, shape index: {}]
  %s2 = inlined_call_operand.hbm [shape: f32[64,128], index: 2, kind: input, shape index: {}]
  %s3 = inlined_call_operand.hbm [shape: f32[2,16,512], index: 3, kind: output, shape index: {}]
  %s4 = sld [smem:[#allocation0]]
  $region57: #{tpu_custom_call.1} parent=0
    _
  %s6 = ssub.s32 1, %s4
  %s7 = scalar_select 0, %s6, %s4
  $region1: #{tpu_custom_call.1} parent=0
    #allocation2 [shape = 'u8[16384]{0}', space=vmem, size = 0x4000, scoped, tag = 'input window, operand 0']
    #allocation3 [shape = 's32[2]{0}', space=sflag, size = 0x8, scoped, tag = 'scoped memory for tpu_custom_call.1']
    #allocation4 [shape = 's32[2]{0}', space=sflag, size = 0x8, scoped, tag = 'scoped memory for tpu_custom_call.1']
    #allocation5 [shape = 'u8[131072]{0}', space=vmem, size = 0x20000, scoped, tag = 'input window, operand 1']
    #allocation6 [shape = 's32[2]{0}', space=sflag, size = 0x8, scoped, tag = 'scoped memory for tpu_custom_call.1']
    #allocation7 [shape = 'u8[32768]{0}', space=vmem, size = 0x8000, scoped, tag = 'input window, operand 2, single buffered']
    #allocation8 [shape = 'u8[16384]{0}', space=vmem, size = 0x4000, scoped, tag = 'output window, operand 0']
    %8 = vsyncpa [#allocation3], 0
    %s9 = scalar_lea.sflag [#allocation3], 1
    %10 = vsyncpa %s9, 0
    %11 = vsyncpa [#allocation6], 0
    %s12 = scalar_lea.sflag [#allocation6], 1
    %13 = vsyncpa %s12, 0
    %14 = vsyncpa [#allocation4], 0
    %s15 = scalar_lea.sflag [#allocation4], 1
    %16 = vsyncpa %s15, 0
    loop: start=0, step=1, limit=10
    $region2: #{tpu_custom_call.1} parent=1 // loop_pre_header
      _
    $region3: #{tpu_custom_call.1} parent=1 // loop_header
      %s18 = sphi 0, %s22
      %p19 = scmp.ge.s32.totalorder %s18, 10
      %s25 = sphi 0, %s37
      %s26 = sphi 0, %s33
      %s27 = sphi 0, %s25
      %s28 = sphi 0, %s26
      %s29 = sphi 0, %s27
      %s30 = sphi 0, %s28
      %s40 = sphi 0, %s42
      %s43 = sphi 0, %s40
      %s44 = sphi 0, %s43
      %s60 = sphi 0, %s44
      %s66 = sphi 0, %s68
      %s69 = sphi 0, %s66
      %s70 = sphi 0, %s69
      %s86 = sphi 0, %s70
      %s90 = sphi 0, %s90
      %s92 = sphi 0, %s90
      %s93 = sphi 0, %s92
      %s107 = sphi 0, %s93
      %s115 = sphi 0, %s117
      %s118 = sphi 0, %s115
      %s119 = sphi 0, %s118
      %s135 = sphi 0, %s119
    $region4: #{tpu_custom_call.1} parent=1 // loop_header_branch
      %21 = sbr.rel (%p19) target = $region8
    $region5: #{tpu_custom_call.1} parent=1 // loop_body
      %s23 = ssub.s32 %s18, 1
      %s24 = ssub.s32 %s18, 2
      %s31 = sadd.s32 1, %s26
      %p32 = scmp.ge.s32.totalorder %s31, 4
      %s33 = scalar_select %p32, 0, %s31
      %s34 = sadd.s32 1, %s25
      %s35 = scalar_select %p32, %s34, %s25
      %p36 = scmp.ge.s32.totalorder %s35, 2
      %s37 = scalar_select %p36, 0, %s35
      %s38 = ssub.s32 %s25, %s37
      %p39 = scmp.eq.s32.totalorder %s38, 0
      %s41 = sadd.s32 %s40, 1
      %s42 = scalar_select %p39, %s40, %s41
      %p45 = pneg %p39
      %p46 = scmp.eq.s32.totalorder %s18, 7
      %p47 = por %p45, %p46
      %p48 = scmp.ne.s32.totalorder %s40, %s43
      %p49 = scmp.eq.s32.totalorder %s18, 0
      %p50 = por %p48, %p49
      %p51 = scmp.ne.s32.totalorder %s40, %s43
      %p52 = scmp.eq.s32.totalorder %s23, 7
      %p53 = por %p51, %p52
      %p54 = scmp.ne.s32.totalorder %s43, %s44
      %p55 = scmp.eq.s32.totalorder %s23, 0
      %p56 = por %p54, %p55
      %p57 = scmp.ne.s32.totalorder %s43, %s44
      %p58 = scmp.eq.s32.totalorder %s24, 7
      %p59 = por %p57, %p58
      %p61 = scmp.ne.s32.totalorder %s44, %s60
      %p62 = scmp.eq.s32.totalorder %s24, 0
      %p63 = por %p61, %p62
      %s64 = ssub.s32 %s26, %s33
      %p65 = scmp.eq.s32.totalorder %s64, 0
      %s67 = sadd.s32 %s66, 1
      %s68 = scalar_select %p65, %s66, %s67
      %p71 = pneg %p65
      %p72 = scmp.eq.s32.totalorder %s18, 7
      %p73 = por %p71, %p72
      %p74 = scmp.ne.s32.totalorder %s66, %s69
      %p75 = scmp.eq.s32.totalorder %s18, 0
      %p76 = por %p74, %p75
      %p77 = scmp.ne.s32.totalorder %s66, %s69
      %p78 = scmp.eq.s32.totalorder %s23, 7
      %p79 = por %p77, %p78
      %p80 = scmp.ne.s32.totalorder %s69, %s70
      %p81 = scmp.eq.s32.totalorder %s23, 0
      %p82 = por %p80, %p81
      %p83 = scmp.ne.s32.totalorder %s69, %s70
      %p84 = scmp.eq.s32.totalorder %s24, 7
      %p85 = por %p83, %p84
      %p87 = scmp.ne.s32.totalorder %s70, %s86
      %p88 = scmp.eq.s32.totalorder %s24, 0
      %p89 = por %p87, %p88
      %s91 = sadd.s32 %s90, 1
      %p94 = scmp.eq.s32.totalorder %s18, 7
      %p95 = scmp.ne.s32.totalorder %s90, %s92
      %p96 = scmp.eq.s32.totalorder %s18, 0
      %p97 = por %p95, %p96
      %p98 = scmp.ne.s32.totalorder %s90, %s92
      %p99 = scmp.eq.s32.totalorder %s23, 7
      %p100 = por %p98, %p99
      %p101 = scmp.ne.s32.totalorder %s92, %s93
      %p102 = scmp.eq.s32.totalorder %s23, 0
      %p103 = por %p101, %p102
      %p104 = scmp.ne.s32.totalorder %s92, %s93
      %p105 = scmp.eq.s32.totalorder %s24, 7
      %p106 = por %p104, %p105
      %p108 = scmp.ne.s32.totalorder %s93, %s107
      %p109 = scmp.eq.s32.totalorder %s24, 0
      %p110 = por %p108, %p109
      %s111 = ssub.s32 %s25, %s37
      %s112 = ssub.s32 %s26, %s33
      %s113 = sor.u32 %s111, %s112
      %p114 = scmp.eq.s32.totalorder %s113, 0
      %s116 = sadd.s32 %s115, 1
      %s117 = scalar_select %p114, %s115, %s116
      %p120 = pneg %p114
      %p121 = scmp.eq.s32.totalorder %s18, 7
      %p122 = por %p120, %p121
      %p123 = scmp.ne.s32.totalorder %s115, %s118
      %p124 = scmp.eq.s32.totalorder %s18, 0
      %p125 = por %p123, %p124
      %p126 = scmp.ne.s32.totalorder %s115, %s118
      %p127 = scmp.eq.s32.totalorder %s23, 7
      %p128 = por %p126, %p127
      %p129 = scmp.ne.s32.totalorder %s118, %s119
      %p130 = scmp.eq.s32.totalorder %s23, 0
      %p131 = por %p129, %p130
      %p132 = scmp.ne.s32.totalorder %s118, %s119
      %p133 = scmp.eq.s32.totalorder %s24, 7
      %p134 = por %p132, %p133
      %p136 = scmp.ne.s32.totalorder %s119, %s135
      %p137 = scmp.eq.s32.totalorder %s24, 0
      %p138 = por %p136, %p137
      %p139 = scmp.le.s32.totalorder 1, %s18
      %p140 = scmp.lt.s32.totalorder %s18, 9
      %p141 = pnand %p139, %p140
      %p142 = pneg %p141
      // Predicated region
      $region9: #{tpu_custom_call.1} parent=5 // pred_check
        _
      $region10: #{tpu_custom_call.1} parent=5 // pred_check_branch
        %144 = sbr.rel (%p141) target = $region12
      $region11: #{tpu_custom_call.1} parent=5 // pred_region
        %s145 = ssub.s32 %s18, 1
        // Predicated region
        $region13: #{tpu_custom_call.1} parent=11 // pred_check
          %p146 = pneg %p103
        $region14: #{tpu_custom_call.1} parent=11 // pred_check_branch
          %148 = sbr.rel (%p146) target = $region16
        $region15: #{tpu_custom_call.1} parent=11 // pred_region
          %s150 = ssub.s32 1024, 1024
          %151 = vsyncadd [#allocation6], %s150
          %s152 = sshll.u32 [#allocation7], 4
          %s153 = int_to_ptr.vmem [resolvable:$true] %s152
          %158 = dma.hbm_to_vmem [thread:$0]  %s2, 1024, %s153, [#allocation6], 128, 128, 8
        $region16: #{tpu_custom_call.1} parent=11 // pred_fallthru
          _
      $region12: #{tpu_custom_call.1} parent=5 // pred_fallthru
        _
      %p159 = scmp.lt.s32.totalorder %s18, 8
      // Predicated region
      $region17: #{tpu_custom_call.1} parent=5 // pred_check
        %p160 = pneg %p159
      $region18: #{tpu_custom_call.1} parent=5 // pred_check_branch
        %162 = sbr.rel (%p160) target = $region20
      $region19: #{tpu_custom_call.1} parent=5 // pred_region
        // Predicated region
        $region21: #{tpu_custom_call.1} parent=19 // pred_check
          %p163 = pneg %p50
        $region22: #{tpu_custom_call.1} parent=19 // pred_check_branch
          %165 = sbr.rel (%p163) target = $region24
        $region23: #{tpu_custom_call.1} parent=19 // pred_region
          %s166 = sand.u32 %s40, 1
          %s167 = scalar_lea.sflag [#allocation3], %s166
          %s168 = sand.u32 %s40, 1
          %s169 = smul.addr %s168, 16
          %s170 = scalar_lea.vmem [#allocation2], %s169
          %s172 = ssub.s32 256, 256
          %173 = vsyncadd %s167, %s172
          %s174 = smul.addr %s25, 2
          %s175 = smul.addr %s174, 128
          %s176 = scalar_lea.hbm %s0, %s175
          %s177 = sshll.u32 %s170, 4
          %s178 = int_to_ptr.vmem [resolvable:$true] %s177
          %183 = dma.hbm_to_vmem [thread:$0]  %s176, 256, %s178, %s167, 128, 128, 8
        $region24: #{tpu_custom_call.1} parent=19 // pred_fallthru
          _
        // Predicated region
        $region25: #{tpu_custom_call.1} parent=19 // pred_check
          %p184 = pneg %p76
        $region26: #{tpu_custom_call.1} parent=19 // pred_check_branch
          %186 = sbr.rel (%p184) target = $region28
        $region27: #{tpu_custom_call.1} parent=19 // pred_region
          %s187 = sand.u32 %s18, 1
          %s188 = scalar_lea.sflag [#allocation6], %s187
          %s189 = sand.u32 %s66, 1
          %s190 = smul.addr %s189, 128
          %s191 = scalar_lea.vmem [#allocation5], %s190
          %s192 = smul.u32 4, %s26
          %s194 = ssub.s32 2048, 2048
          %195 = vsyncadd %s188, %s194
          %s196 = smul.addr %s192, 128
          %s197 = scalar_lea.hbm %s1, %s196
          %s198 = sshll.u32 %s191, 4
          %s199 = int_to_ptr.vmem [resolvable:$true] %s198
          %204 = dma.hbm_to_vmem [thread:$0]  %s197, 2048, %s199, %s188, 2048, 512, 32
        $region28: #{tpu_custom_call.1} parent=19 // pred_fallthru
          _
      $region20: #{tpu_custom_call.1} parent=5 // pred_fallthru
        _
      %p205 = scmp.le.s32.totalorder 1, %s18
      %p206 = scmp.lt.s32.totalorder %s18, 9
      %p207 = pnand %p205, %p206
      %p208 = pneg %p207
      // Predicated region
      $region29: #{tpu_custom_call.1} parent=5 // pred_check
        _
      $region30: #{tpu_custom_call.1} parent=5 // pred_check_branch
        %210 = sbr.rel (%p207) target = $region32
      $region31: #{tpu_custom_call.1} parent=5 // pred_region
        %s211 = ssub.s32 %s18, 1
        %s212 = sand.u32 %s43, 1
        %s213 = scalar_lea.sflag [#allocation3], %s212
        %s214 = sand.u32 %s43, 1
        %s215 = smul.addr %s214, 16
        %s216 = scalar_lea.vmem [#allocation2], %s215
        // Predicated region
        $region33: #{tpu_custom_call.1} parent=31 // pred_check
          %p217 = pneg %p56
        $region34: #{tpu_custom_call.1} parent=31 // pred_check_branch
          %219 = sbr.rel (%p217) target = $region36
        $region35: #{tpu_custom_call.1} parent=31 // pred_region
          %220 = dma.done %s213, 256
        $region36: #{tpu_custom_call.1} parent=31 // pred_fallthru
          _
        %s221 = sand.u32 %s23, 1
        %s222 = scalar_lea.sflag [#allocation6], %s221
        %s223 = sand.u32 %s69, 1
        %s224 = smul.addr %s223, 128
        %s225 = scalar_lea.vmem [#allocation5], %s224
        // Predicated region
        $region37: #{tpu_custom_call.1} parent=31 // pred_check
          %p226 = pneg %p82
        $region38: #{tpu_custom_call.1} parent=31 // pred_check_branch
          %228 = sbr.rel (%p226) target = $region40
        $region39: #{tpu_custom_call.1} parent=31 // pred_region
          %229 = dma.done %s222, 2048
        $region40: #{tpu_custom_call.1} parent=31 // pred_fallthru
          _
        // Predicated region
        $region41: #{tpu_custom_call.1} parent=31 // pred_check
          %p230 = pneg %p103
        $region42: #{tpu_custom_call.1} parent=31 // pred_check_branch
          %232 = sbr.rel (%p230) target = $region44
        $region43: #{tpu_custom_call.1} parent=31 // pred_region
          %233 = dma.done [#allocation6], 1024
        $region44: #{tpu_custom_call.1} parent=31 // pred_fallthru
          _
        %s234 = sand.u32 %s43, 1
        %s235 = scalar_lea.sflag [#allocation3], %s234
        %s236 = sand.u32 %s43, 1
        %s237 = smul.addr %s236, 16
        %s238 = scalar_lea.vmem [#allocation2], %s237
        %p239 = pneg %p56
        %p240 = pneg %p53
        %s241 = sand.u32 %s23, 1
        %s242 = scalar_lea.sflag [#allocation6], %s241
        %s243 = sand.u32 %s69, 1
        %s244 = smul.addr %s243, 128
        %s245 = scalar_lea.vmem [#allocation5], %s244
        %p246 = pneg %p82
        %p247 = pneg %p79
        %p248 = pneg %p103
        %p249 = pneg %p100
        %p250 = pneg %p131
        %p251 = pneg %p128
        %s252 = sand.u32 %s118, 1
        %s253 = scalar_lea.sflag [#allocation4], %s252
        %s254 = sand.u32 %s118, 1
        %s255 = smul.addr %s254, 16
        %s256 = scalar_lea.vmem [#allocation8], %s255
        %s257 = smul.u32 4, %s28
        %v258 = vld [vmem:[%s216] sm:$0xff]
        %v259 = vld [vmem:[%s216 + $0x8] sm:$0xff]
        %v260 = vld [vmem:[%s225] sm:$0xff]
        %v261 = vld [vmem:[%s225 + $0x8] sm:$0xff]
        %v262 = vld [vmem:[%s225 + $0x10] sm:$0xff]
        %v263 = vld [vmem:[%s225 + $0x18] sm:$0xff]
        %v264 = vld [vmem:[%s225 + $0x20] sm:$0xff]
        %v265 = vld [vmem:[%s225 + $0x28] sm:$0xff]
        %v266 = vld [vmem:[%s225 + $0x30] sm:$0xff]
        %v267 = vld [vmem:[%s225 + $0x38] sm:$0xff]
        %v268 = vld [vmem:[%s225 + $0x40] sm:$0xff]
        %v269 = vld [vmem:[%s225 + $0x48] sm:$0xff]
        %v270 = vld [vmem:[%s225 + $0x50] sm:$0xff]
        %v271 = vld [vmem:[%s225 + $0x58] sm:$0xff]
        %v272 = vld [vmem:[%s225 + $0x60] sm:$0xff]
        %v273 = vld [vmem:[%s225 + $0x68] sm:$0xff]
        %v274 = vld [vmem:[%s225 + $0x70] sm:$0xff]
        %v275 = vld [vmem:[%s225 + $0x78] sm:$0xff]
        %v276 = vld [vmem:[#allocation7] sm:$0xff]
        %v277 = vld [vmem:[#allocation7 + $0x8] sm:$0xff]
        %v278 = vld [vmem:[#allocation7 + $0x10] sm:$0xff]
        %v279 = vld [vmem:[#allocation7 + $0x18] sm:$0xff]
        %v280 = vld [vmem:[#allocation7 + $0x20] sm:$0xff]
        %v281 = vld [vmem:[#allocation7 + $0x28] sm:$0xff]
        %v282 = vld [vmem:[#allocation7 + $0x30] sm:$0xff]
        %v283 = vld [vmem:[#allocation7 + $0x38] sm:$0xff]
        %vm284 = vcmask 261120
        %v286 = vsel %vm284, %v258, 0
        %v289 = vsel %vm284, %v259, 0
        %291 = vmatprep.subr.mxu0 %v261
        %292 = vmatpush1.msra.mxu0 %v260
        %293 = vmatprep.subr.mxu0 %v265
        %294 = vmatpush1.msra.mxu0 %v264
        %295 = vmatprep.subr.mxu0 %v269
        %296 = vmatpush1.msra.mxu0 %v268
        %297 = vmatprep.subr.mxu0 %v273
        %298 = vmatpush1.msra.mxu0 %v272
        %299 = vmatprep.subr.mxu0 0.0
        %300 = vmatpush1.msra.mxu0 0.0
        %301 = vmatprep.subr.mxu0 0.0
        %302 = vmatpush1.msra.mxu0 0.0
        %303 = vmatprep.subr.mxu0 0.0
        %304 = vmatpush1.msra.mxu0 0.0
        %305 = vmatprep.subr.mxu0 0.0
        %306 = vmatpush1.msra.mxu0 0.0
        %307 = vmatprep.subr.mxu0 0.0
        %308 = vmatpush1.msra.mxu0 0.0
        %309 = vmatprep.subr.mxu0 0.0
        %310 = vmatpush1.msra.mxu0 0.0
        %311 = vmatprep.subr.mxu0 0.0
        %312 = vmatpush1.msra.mxu0 0.0
        %313 = vmatprep.subr.mxu0 0.0
        %314 = vmatpush1.msra.mxu0 0.0
        %315 = vmatprep.subr.mxu0 0.0
        %316 = vmatpush1.msra.mxu0 0.0
        %317 = vmatprep.subr.mxu0 0.0
        %318 = vmatpush1.msra.mxu0 0.0
        %319 = vmatprep.subr.mxu0 0.0
        %320 = vmatpush1.msra.mxu0 0.0
        %321 = vmatprep.subr.mxu0 0.0
        %322 = vmatpush1.msra.mxu0 0.0
        %323 = vmatprep.subr.mxu0 0.0
        %324 = vmatpush1.msra.mxu0 0.0
        %325 = vmatprep.subr.mxu0 0.0
        %326 = vmatpush1.msra.mxu0 0.0
        %327 = vmatprep.subr.mxu0 0.0
        %328 = vmatpush1.msra.mxu0 0.0
        %329 = vmatprep.subr.mxu0 0.0
        %330 = vmatpush1.msra.mxu0 0.0
        %331 = vmatprep.subr.mxu0 0.0
        %332 = vmatpush1.msra.mxu0 0.0
        %333 = vmatprep.subr.mxu0 0.0
        %334 = vmatpush1.msra.mxu0 0.0
        %335 = vmatprep.subr.mxu0 0.0
        %336 = vmatpush1.msra.mxu0 0.0
        %337 = vmatprep.subr.mxu0 0.0
        %338 = vmatpush1.msra.mxu0 0.0
        %339 = vmatprep.subr.mxu0 0.0
        %340 = vmatpush1.msra.mxu0 0.0
        %341 = vmatprep.subr.mxu0 0.0
        %342 = vmatpush1.msra.mxu0 0.0
        %343 = vmatprep.subr.mxu0 0.0
        %344 = vmatpush1.msra.mxu0 0.0
        %345 = vmatprep.subr.mxu0 0.0
        %346 = vmatpush1.msra.mxu0 0.0
        %347 = vmatprep.subr.mxu0 0.0
        %348 = vmatpush1.msra.mxu0 0.0
        %349 = vmatprep.subr.mxu0 0.0
        %350 = vmatpush1.msra.mxu0 0.0
        %351 = vmatprep.subr.mxu0 0.0
        %352 = vmatpush1.msra.mxu0 0.0
        %353 = vmatprep.subr.mxu0 0.0
        %354 = vmatpush1.msra.mxu0 0.0
        %355 = vmatprep.mubr.f32.mxu0 0.0
        %356 = vmatmul.mubr.f32.gmra.mrb[0].mxu0 %v286
        %v357 = vpop.f32.mrb[0].mxu0
        %v358 = vadd.f32 0.0, %v357
        %v359 = vpop.f32.mrb[0].mxu0
        %v360 = vadd.f32 0.0, %v359
        %361 = vmatprep.mubr.f32.mxu0 0.0
        %362 = vmatmul.mubr.f32.gmra.mrb[0].mxu0 %v289
        %v363 = vpop.f32.mrb[0].mxu0
        %v364 = vadd.f32 0.0, %v363
        %v365 = vpop.f32.mrb[0].mxu0
        %v366 = vadd.f32 0.0, %v365
        %367 = vdwg.mxu0
        %368 = vmatprep.subr.mxu0 %v263
        %369 = vmatpush1.msra.mxu0 %v262
        %370 = vmatprep.subr.mxu0 %v267
        %371 = vmatpush1.msra.mxu0 %v266
        %372 = vmatprep.subr.mxu0 %v271
        %373 = vmatpush1.msra.mxu0 %v270
        %374 = vmatprep.subr.mxu0 %v275
        %375 = vmatpush1.msra.mxu0 %v274
        %376 = vmatprep.subr.mxu0 0.0
        %377 = vmatpush1.msra.mxu0 0.0
        %378 = vmatprep.subr.mxu0 0.0
        %379 = vmatpush1.msra.mxu0 0.0
        %380 = vmatprep.subr.mxu0 0.0
        %381 = vmatpush1.msra.mxu0 0.0
        %382 = vmatprep.subr.mxu0 0.0
        %383 = vmatpush1.msra.mxu0 0.0
        %384 = vmatprep.subr.mxu0 0.0
        %385 = vmatpush1.msra.mxu0 0.0
        %386 = vmatprep.subr.mxu0 0.0
        %387 = vmatpush1.msra.mxu0 0.0
        %388 = vmatprep.subr.mxu0 0.0
        %389 = vmatpush1.msra.mxu0 0.0
        %390 = vmatprep.subr.mxu0 0.0
        %391 = vmatpush1.msra.mxu0 0.0
        %392 = vmatprep.subr.mxu0 0.0
        %393 = vmatpush1.msra.mxu0 0.0
        %394 = vmatprep.subr.mxu0 0.0
        %395 = vmatpush1.msra.mxu0 0.0
        %396 = vmatprep.subr.mxu0 0.0
        %397 = vmatpush1.msra.mxu0 0.0
        %398 = vmatprep.subr.mxu0 0.0
        %399 = vmatpush1.msra.mxu0 0.0
        %400 = vmatprep.subr.mxu0 0.0
        %401 = vmatpush1.msra.mxu0 0.0
        %402 = vmatprep.subr.mxu0 0.0
        %403 = vmatpush1.msra.mxu0 0.0
        %404 = vmatprep.subr.mxu0 0.0
        %405 = vmatpush1.msra.mxu0 0.0
        %406 = vmatprep.subr.mxu0 0.0
        %407 = vmatpush1.msra.mxu0 0.0
        %408 = vmatprep.subr.mxu0 0.0
        %409 = vmatpush1.msra.mxu0 0.0
        %410 = vmatprep.subr.mxu0 0.0
        %411 = vmatpush1.msra.mxu0 0.0
        %412 = vmatprep.subr.mxu0 0.0
        %413 = vmatpush1.msra.mxu0 0.0
        %414 = vmatprep.subr.mxu0 0.0
        %415 = vmatpush1.msra.mxu0 0.0
        %416 = vmatprep.subr.mxu0 0.0
        %417 = vmatpush1.msra.mxu0 0.0
        %418 = vmatprep.subr.mxu0 0.0
        %419 = vmatpush1.msra.mxu0 0.0
        %420 = vmatprep.subr.mxu0 0.0
        %421 = vmatpush1.msra.mxu0 0.0
        %422 = vmatprep.subr.mxu0 0.0
        %423 = vmatpush1.msra.mxu0 0.0
        %424 = vmatprep.subr.mxu0 0.0
        %425 = vmatpush1.msra.mxu0 0.0
        %426 = vmatprep.subr.mxu0 0.0
        %427 = vmatpush1.msra.mxu0 0.0
        %428 = vmatprep.subr.mxu0 0.0
        %429 = vmatpush1.msra.mxu0 0.0
        %430 = vmatprep.subr.mxu0 0.0
        %431 = vmatpush1.msra.mxu0 0.0
        %432 = vmatprep.mubr.f32.mxu0 0.0
        %433 = vmatmul.mubr.f32.gmra.mrb[0].mxu0 %v286
        %v434 = vpop.f32.mrb[0].mxu0
        %v435 = vadd.f32 0.0, %v434
        %v436 = vpop.f32.mrb[0].mxu0
        %v437 = vadd.f32 0.0, %v436
        %438 = vmatprep.mubr.f32.mxu0 0.0
        %439 = vmatmul.mubr.f32.gmra.mrb[0].mxu0 %v289
        %v440 = vpop.f32.mrb[0].mxu0
        %v441 = vadd.f32 0.0, %v440
        %v442 = vpop.f32.mrb[0].mxu0
        %v443 = vadd.f32 0.0, %v442
        %444 = vdwg.mxu0
        %447 = vrot.lane.b32.xlu0 %v435, 64
        %v448 = vpop.permute.xlu0 %447
        %449 = vrot.lane.b32.xlu0 %v441, 64
        %v450 = vpop.permute.xlu0 %449
        %vm451 = vcmask 523264
        %v452 = vsel %vm451, %v435, 0
        %v454 = vsel %vm451, %v441, 0
        %v456 = vsel %vm451, %v448, 0
        %v458 = vsel %vm451, %v450, 0
        %460 = vmatprep.subr.mxu0 0.0
        %461 = vmatpush1.msra.mxu0 %v276
        %462 = vmatprep.subr.mxu0 0.0
        %463 = vmatpush1.msra.mxu0 %v277
        %464 = vmatprep.subr.mxu0 0.0
        %465 = vmatpush1.msra.mxu0 %v278
        %466 = vmatprep.subr.mxu0 0.0
        %467 = vmatpush1.msra.mxu0 %v279
        %468 = vmatprep.subr.mxu0 0.0
        %469 = vmatpush1.msra.mxu0 %v280
        %470 = vmatprep.subr.mxu0 0.0
        %471 = vmatpush1.msra.mxu0 %v281
        %472 = vmatprep.subr.mxu0 0.0
        %473 = vmatpush1.msra.mxu0 %v282
        %474 = vmatprep.subr.mxu0 0.0
        %475 = vmatpush1.msra.mxu0 %v283
        %476 = vmatprep.subr.mxu0 0.0
        %477 = vmatpush1.msra.mxu0 0.0
        %478 = vmatprep.subr.mxu0 0.0
        %479 = vmatpush1.msra.mxu0 0.0
        %480 = vmatprep.subr.mxu0 0.0
        %481 = vmatpush1.msra.mxu0 0.0
        %482 = vmatprep.subr.mxu0 0.0
        %483 = vmatpush1.msra.mxu0 0.0
        %484 = vmatprep.subr.mxu0 0.0
        %485 = vmatpush1.msra.mxu0 0.0
        %486 = vmatprep.subr.mxu0 0.0
        %487 = vmatpush1.msra.mxu0 0.0
        %488 = vmatprep.subr.mxu0 0.0
        %489 = vmatpush1.msra.mxu0 0.0
        %490 = vmatprep.subr.mxu0 0.0
        %491 = vmatpush1.msra.mxu0 0.0
        %492 = vmatprep.subr.mxu0 0.0
        %493 = vmatpush1.msra.mxu0 0.0
        %494 = vmatprep.subr.mxu0 0.0
        %495 = vmatpush1.msra.mxu0 0.0
        %496 = vmatprep.subr.mxu0 0.0
        %497 = vmatpush1.msra.mxu0 0.0
        %498 = vmatprep.subr.mxu0 0.0
        %499 = vmatpush1.msra.mxu0 0.0
        %500 = vmatprep.subr.mxu0 0.0
        %501 = vmatpush1.msra.mxu0 0.0
        %502 = vmatprep.subr.mxu0 0.0
        %503 = vmatpush1.msra.mxu0 0.0
        %504 = vmatprep.subr.mxu0 0.0
        %505 = vmatpush1.msra.mxu0 0.0
        %506 = vmatprep.subr.mxu0 0.0
        %507 = vmatpush1.msra.mxu0 0.0
        %508 = vmatprep.subr.mxu0 0.0
        %509 = vmatpush1.msra.mxu0 0.0
        %510 = vmatprep.subr.mxu0 0.0
        %511 = vmatpush1.msra.mxu0 0.0
        %512 = vmatprep.subr.mxu0 0.0
        %513 = vmatpush1.msra.mxu0 0.0
        %514 = vmatprep.subr.mxu0 0.0
        %515 = vmatpush1.msra.mxu0 0.0
        %516 = vmatprep.subr.mxu0 0.0
        %517 = vmatpush1.msra.mxu0 0.0
        %518 = vmatprep.subr.mxu0 0.0
        %519 = vmatpush1.msra.mxu0 0.0
        %520 = vmatprep.subr.mxu0 0.0
        %521 = vmatpush1.msra.mxu0 0.0
        %522 = vmatprep.subr.mxu0 0.0
        %523 = vmatpush1.msra.mxu0 0.0
        %524 = vmatprep.mubr.f32.mxu0 0.0
        %525 = vmatmul.mubr.f32.gmra.mrb[0].mxu0 %v452
        %v526 = vpop.f32.mrb[0].mxu0
        %v527 = vadd.f32 0.0, %v526
        %v528 = vpop.f32.mrb[0].mxu0
        %529 = vmatprep.mubr.f32.mxu0 0.0
        %530 = vmatmul.mubr.f32.gmra.mrb[0].mxu0 %v454
        %v531 = vpop.f32.mrb[0].mxu0
        %v532 = vadd.f32 0.0, %v531
        %v533 = vpop.f32.mrb[0].mxu0
        %534 = vmatprep.mubr.f32.mxu0 0.0
        %535 = vmatmul.mubr.f32.gmra.mrb[0].mxu0 %v456
        %v536 = vpop.f32.mrb[0].mxu0
        %v537 = vadd.f32 0.0, %v536
        %v538 = vpop.f32.mrb[0].mxu0
        %539 = vmatprep.mubr.f32.mxu0 0.0
        %540 = vmatmul.mubr.f32.gmra.mrb[0].mxu0 %v458
        %v541 = vpop.f32.mrb[0].mxu0
        %v542 = vadd.f32 0.0, %v541
        %v543 = vpop.f32.mrb[0].mxu0
        %544 = vdwg.mxu0
        %546 = vrot.lane.b32.xlu0 %v527, 1
        %v547 = vpop.permute.xlu0 %546
        %549 = vrot.lane.b32.xlu0 %v527, 2
        %v550 = vpop.permute.xlu0 %549
        %552 = vrot.lane.b32.xlu0 %v527, 3
        %v553 = vpop.permute.xlu0 %552
        %555 = vrot.lane.b32.xlu0 %v527, 4
        %v556 = vpop.permute.xlu0 %555
        %558 = vrot.lane.b32.xlu0 %v527, 5
        %v559 = vpop.permute.xlu0 %558
        %561 = vrot.lane.b32.xlu0 %v527, 6
        %v562 = vpop.permute.xlu0 %561
        %564 = vrot.lane.b32.xlu0 %v527, 7
        %v565 = vpop.permute.xlu0 %564
        %568 = vrot.lane.b32.xlu0 %v532, 8
        %v569 = vpop.permute.xlu0 %568
        %571 = vrot.lane.b32.xlu0 %v532, 9
        %v572 = vpop.permute.xlu0 %571
        %574 = vrot.lane.b32.xlu0 %v532, 10
        %v575 = vpop.permute.xlu0 %574
        %577 = vrot.lane.b32.xlu0 %v532, 11
        %v578 = vpop.permute.xlu0 %577
        %580 = vrot.lane.b32.xlu0 %v532, 12
        %v581 = vpop.permute.xlu0 %580
        %583 = vrot.lane.b32.xlu0 %v532, 13
        %v584 = vpop.permute.xlu0 %583
        %586 = vrot.lane.b32.xlu0 %v532, 14
        %v587 = vpop.permute.xlu0 %586
        %589 = vrot.lane.b32.xlu0 %v532, 15
        %v590 = vpop.permute.xlu0 %589
        %vm592 = vcmask 1040384
        %v593 = vsel %vm592, %v527, %v547
        %vm594 = vcmask 1041408
        %v595 = vsel %vm594, %v593, %v550
        %vm596 = vcmask 1042432
        %v597 = vsel %vm596, %v595, %v553
        %vm598 = vcmask 1043456
        %v599 = vsel %vm598, %v597, %v556
        %vm600 = vcmask 1044480
        %v601 = vsel %vm600, %v599, %v559
        %vm602 = vcmask 1045504
        %v603 = vsel %vm602, %v601, %v562
        %vm604 = vcmask 1046528
        %v605 = vsel %vm604, %v603, %v565
        %v606 = vsel %vm592, %v569, %v572
        %v607 = vsel %vm594, %v606, %v575
        %v608 = vsel %vm596, %v607, %v578
        %v609 = vsel %vm598, %v608, %v581
        %v610 = vsel %vm600, %v609, %v584
        %v611 = vsel %vm602, %v610, %v587
        %v612 = vsel %vm604, %v611, %v590
        %615 = vrot.lane.b32.xlu0 %v605, 113
        %v616 = vpop.permute.xlu0 %615
        %617 = vrot.lane.b32.xlu0 %v612, 113
        %v618 = vpop.permute.xlu0 %617
        %v622 = vsel %vm451, %v358, 0
        %v625 = vsel %vm451, %v364, 0
        %v628 = vsel %vm451, %v360, 0
        %v631 = vsel %vm451, %v366, 0
        %633 = vmatprep.subr.mxu0 0.0
        %634 = vmatpush1.xpose.msra.mxu0 %v628
        %635 = vmatprep.subr.mxu0 0.0
        %636 = vmatpush1.xpose.msra.mxu0 %v631
        %637 = vmatprep.subr.mxu0 0.0
        %638 = vmatpush1.xpose.msra.mxu0 0.0
        %639 = vmatprep.subr.mxu0 0.0
        %640 = vmatpush1.xpose.msra.mxu0 0.0
        %641 = vmatprep.subr.mxu0 0.0
        %642 = vmatpush1.xpose.msra.mxu0 0.0
        %643 = vmatprep.subr.mxu0 0.0
        %644 = vmatpush1.xpose.msra.mxu0 0.0
        %645 = vmatprep.subr.mxu0 0.0
        %646 = vmatpush1.xpose.msra.mxu0 0.0
        %647 = vmatprep.subr.mxu0 0.0
        %648 = vmatpush1.xpose.msra.mxu0 0.0
        %649 = vmatprep.subr.mxu0 0.0
        %650 = vmatpush1.xpose.msra.mxu0 0.0
        %651 = vmatprep.subr.mxu0 0.0
        %652 = vmatpush1.xpose.msra.mxu0 0.0
        %653 = vmatprep.subr.mxu0 0.0
        %654 = vmatpush1.xpose.msra.mxu0 0.0
        %655 = vmatprep.subr.mxu0 0.0
        %656 = vmatpush1.xpose.msra.mxu0 0.0
        %657 = vmatprep.subr.mxu0 0.0
        %658 = vmatpush1.xpose.msra.mxu0 0.0
        %659 = vmatprep.subr.mxu0 0.0
        %660 = vmatpush1.xpose.msra.mxu0 0.0
        %661 = vmatprep.subr.mxu0 0.0
        %662 = vmatpush1.xpose.msra.mxu0 0.0
        %663 = vmatprep.subr.mxu0 0.0
        %664 = vmatpush1.xpose.msra.mxu0 0.0
        %665 = vmatprep.subr.mxu0 0.0
        %666 = vmatpush1.xpose.msra.mxu0 0.0
        %667 = vmatprep.subr.mxu0 0.0
        %668 = vmatpush1.xpose.msra.mxu0 0.0
        %669 = vmatprep.subr.mxu0 0.0
        %670 = vmatpush1.xpose.msra.mxu0 0.0
        %671 = vmatprep.subr.mxu0 0.0
        %672 = vmatpush1.xpose.msra.mxu0 0.0
        %673 = vmatprep.subr.mxu0 0.0
        %674 = vmatpush1.xpose.msra.mxu0 0.0
        %675 = vmatprep.subr.mxu0 0.0
        %676 = vmatpush1.xpose.msra.mxu0 0.0
        %677 = vmatprep.subr.mxu0 0.0
        %678 = vmatpush1.xpose.msra.mxu0 0.0
        %679 = vmatprep.subr.mxu0 0.0
        %680 = vmatpush1.xpose.msra.mxu0 0.0
        %681 = vmatprep.subr.mxu0 0.0
        %682 = vmatpush1.xpose.msra.mxu0 0.0
        %683 = vmatprep.subr.mxu0 0.0
        %684 = vmatpush1.xpose.msra.mxu0 0.0
        %685 = vmatprep.subr.mxu0 0.0
        %686 = vmatpush1.xpose.msra.mxu0 0.0
        %687 = vmatprep.subr.mxu0 0.0
        %688 = vmatpush1.xpose.msra.mxu0 0.0
        %689 = vmatprep.subr.mxu0 0.0
        %690 = vmatpush1.xpose.msra.mxu0 0.0
        %691 = vmatprep.subr.mxu0 0.0
        %692 = vmatpush1.xpose.msra.mxu0 0.0
        %693 = vmatprep.subr.mxu0 0.0
        %694 = vmatpush1.xpose.msra.mxu0 0.0
        %695 = vmatprep.subr.mxu0 0.0
        %696 = vmatpush1.xpose.msra.mxu0 0.0
        %697 = vmatprep.mubr.f32.mxu0 0.0
        %698 = vmatmul.mubr.f32.gmra.mrb[0].mxu0 %v622
        %v699 = vpop.f32.mrb[0].mxu0
        %v700 = vadd.f32 %v616, %v699
        %v701 = vpop.f32.mrb[0].mxu0
        %702 = vmatprep.mubr.f32.mxu0 0.0
        %703 = vmatmul.mubr.f32.gmra.mrb[0].mxu0 %v625
        %v704 = vpop.f32.mrb[0].mxu0
        %v705 = vadd.f32 %v618, %v704
        %v706 = vpop.f32.mrb[0].mxu0
        %707 = vdwg.mxu0
        %v708 = vmul.f32 %v700, 0.125
        %v709 = vmul.f32 %v705, 0.125
        %vm710 = vcmask 130048
        %v711 = vsel %vm710, %v708, -inf
        %712 = vmax.xlane.f32.xlu0 %v711
        %v713 = vpop.xlane.xlu0 %712
        %v714 = vsel %vm710, %v709, -inf
        %715 = vmax.xlane.f32.xlu0 %v714
        %v716 = vpop.xlane.xlu0 %715
        %v717 = vsub.f32 %v708, %v713
        %v718 = vsub.f32 %v709, %v716
        %v719 = vmul.f32 %v717, 1.442695
        %v720 = vpow.pop %v719
        %v721 = vmul.f32 %v718, 1.442695
        %v722 = vpow.pop %v721
        %v723 = vsel %vm710, %v720, 0.0
        %724 = vadd.xlane.f32.xlu0 %v723
        %v725 = vpop.xlane.xlu0 %724
        %v726 = vsel %vm710, %v722, 0.0
        %727 = vadd.xlane.f32.xlu0 %v726
        %v728 = vpop.xlane.xlu0 %727
        %v729 = vrcp.pop %v725
        %v730 = vrcp.pop %v728
        %v731 = vmul.f32 %v725, %v729
        %v732 = vmul.f32 %v728, %v730
        %v733 = vsub.f32 2.0, %v731
        %v734 = vsub.f32 2.0, %v732
        %v735 = vmul.f32 %v729, %v733
        %v736 = vmul.f32 %v730, %v734
        %v737 = vmul.f32 %v720, %v735
        %v738 = vmul.f32 %v722, %v736
        %v740 = vsel %vm710, %v737, 0
        %v743 = vsel %vm710, %v738, 0
        %745 = vmatprep.subr.mxu0 0.0
        %746 = vmatpush1.msra.mxu0 %v437
        %747 = vmatprep.subr.mxu0 0.0
        %748 = vmatpush1.msra.mxu0 %v443
        %749 = vmatprep.subr.mxu0 0.0
        %750 = vmatpush1.msra.mxu0 0.0
        %751 = vmatprep.subr.mxu0 0.0
        %752 = vmatpush1.msra.mxu0 0.0
        %753 = vmatprep.subr.mxu0 0.0
        %754 = vmatpush1.msra.mxu0 0.0
        %755 = vmatprep.subr.mxu0 0.0
        %756 = vmatpush1.msra.mxu0 0.0
        %757 = vmatprep.subr.mxu0 0.0
        %758 = vmatpush1.msra.mxu0 0.0
        %759 = vmatprep.subr.mxu0 0.0
        %760 = vmatpush1.msra.mxu0 0.0
        %761 = vmatprep.subr.mxu0 0.0
        %762 = vmatpush1.msra.mxu0 0.0
        %763 = vmatprep.subr.mxu0 0.0
        %764 = vmatpush1.msra.mxu0 0.0
        %765 = vmatprep.subr.mxu0 0.0
        %766 = vmatpush1.msra.mxu0 0.0
        %767 = vmatprep.subr.mxu0 0.0
        %768 = vmatpush1.msra.mxu0 0.0
        %769 = vmatprep.subr.mxu0 0.0
        %770 = vmatpush1.msra.mxu0 0.0
        %771 = vmatprep.subr.mxu0 0.0
        %772 = vmatpush1.msra.mxu0 0.0
        %773 = vmatprep.subr.mxu0 0.0
        %774 = vmatpush1.msra.mxu0 0.0
        %775 = vmatprep.subr.mxu0 0.0
        %776 = vmatpush1.msra.mxu0 0.0
        %777 = vmatprep.subr.mxu0 0.0
        %778 = vmatpush1.msra.mxu0 0.0
        %779 = vmatprep.subr.mxu0 0.0
        %780 = vmatpush1.msra.mxu0 0.0
        %781 = vmatprep.subr.mxu0 0.0
        %782 = vmatpush1.msra.mxu0 0.0
        %783 = vmatprep.subr.mxu0 0.0
        %784 = vmatpush1.msra.mxu0 0.0
        %785 = vmatprep.subr.mxu0 0.0
        %786 = vmatpush1.msra.mxu0 0.0
        %787 = vmatprep.subr.mxu0 0.0
        %788 = vmatpush1.msra.mxu0 0.0
        %789 = vmatprep.subr.mxu0 0.0
        %790 = vmatpush1.msra.mxu0 0.0
        %791 = vmatprep.subr.mxu0 0.0
        %792 = vmatpush1.msra.mxu0 0.0
        %793 = vmatprep.subr.mxu0 0.0
        %794 = vmatpush1.msra.mxu0 0.0
        %795 = vmatprep.subr.mxu0 0.0
        %796 = vmatpush1.msra.mxu0 0.0
        %797 = vmatprep.subr.mxu0 0.0
        %798 = vmatpush1.msra.mxu0 0.0
        %799 = vmatprep.subr.mxu0 0.0
        %800 = vmatpush1.msra.mxu0 0.0
        %801 = vmatprep.subr.mxu0 0.0
        %802 = vmatpush1.msra.mxu0 0.0
        %803 = vmatprep.subr.mxu0 0.0
        %804 = vmatpush1.msra.mxu0 0.0
        %805 = vmatprep.subr.mxu0 0.0
        %806 = vmatpush1.msra.mxu0 0.0
        %807 = vmatprep.subr.mxu0 0.0
        %808 = vmatpush1.msra.mxu0 0.0
        %809 = vmatprep.mubr.f32.mxu0 0.0
        %810 = vmatmul.mubr.f32.gmra.mrb[0].mxu0 %v740
        %v811 = vpop.f32.mrb[0].mxu0
        %v812 = vadd.f32 0.0, %v811
        %v813 = vpop.f32.mrb[0].mxu0
        %814 = vmatprep.mubr.f32.mxu0 0.0
        %815 = vmatmul.mubr.f32.gmra.mrb[0].mxu0 %v743
        %v816 = vpop.f32.mrb[0].mxu0
        %v817 = vadd.f32 0.0, %v816
        %v818 = vpop.f32.mrb[0].mxu0
        %819 = vdwg.mxu0
        %821 = vrot.lane.b32.xlu0 %v537, 1
        %v822 = vpop.permute.xlu0 %821
        %824 = vrot.lane.b32.xlu0 %v537, 2
        %v825 = vpop.permute.xlu0 %824
        %827 = vrot.lane.b32.xlu0 %v537, 3
        %v828 = vpop.permute.xlu0 %827
        %830 = vrot.lane.b32.xlu0 %v537, 4
        %v831 = vpop.permute.xlu0 %830
        %833 = vrot.lane.b32.xlu0 %v537, 5
        %v834 = vpop.permute.xlu0 %833
        %836 = vrot.lane.b32.xlu0 %v537, 6
        %v837 = vpop.permute.xlu0 %836
        %839 = vrot.lane.b32.xlu0 %v537, 7
        %v840 = vpop.permute.xlu0 %839
        %843 = vrot.lane.b32.xlu0 %v542, 8
        %v844 = vpop.permute.xlu0 %843
        %846 = vrot.lane.b32.xlu0 %v542, 9
        %v847 = vpop.permute.xlu0 %846
        %849 = vrot.lane.b32.xlu0 %v542, 10
        %v850 = vpop.permute.xlu0 %849
        %852 = vrot.lane.b32.xlu0 %v542, 11
        %v853 = vpop.permute.xlu0 %852
        %855 = vrot.lane.b32.xlu0 %v542, 12
        %v856 = vpop.permute.xlu0 %855
        %858 = vrot.lane.b32.xlu0 %v542, 13
        %v859 = vpop.permute.xlu0 %858
        %861 = vrot.lane.b32.xlu0 %v542, 14
        %v862 = vpop.permute.xlu0 %861
        %864 = vrot.lane.b32.xlu0 %v542, 15
        %v865 = vpop.permute.xlu0 %864
        %v867 = vsel %vm592, %v537, %v822
        %v868 = vsel %vm594, %v867, %v825
        %v869 = vsel %vm596, %v868, %v828
        %v870 = vsel %vm598, %v869, %v831
        %v871 = vsel %vm600, %v870, %v834
        %v872 = vsel %vm602, %v871, %v837
        %v873 = vsel %vm604, %v872, %v840
        %v874 = vsel %vm592, %v844, %v847
        %v875 = vsel %vm594, %v874, %v850
        %v876 = vsel %vm596, %v875, %v853
        %v877 = vsel %vm598, %v876, %v856
        %v878 = vsel %vm600, %v877, %v859
        %v879 = vsel %vm602, %v878, %v862
        %v880 = vsel %vm604, %v879, %v865
        %881 = vrot.lane.b32.xlu0 %v358, 64
        %v882 = vpop.permute.xlu0 %881
        %883 = vrot.lane.b32.xlu0 %v364, 64
        %v884 = vpop.permute.xlu0 %883
        %885 = vrot.lane.b32.xlu0 %v360, 64
        %v886 = vpop.permute.xlu0 %885
        %887 = vrot.lane.b32.xlu0 %v366, 64
        %v888 = vpop.permute.xlu0 %887
        %891 = vrot.lane.b32.xlu0 %v873, 113
        %v892 = vpop.permute.xlu0 %891
        %893 = vrot.lane.b32.xlu0 %v880, 113
        %v894 = vpop.permute.xlu0 %893
        %v897 = vsel %vm451, %v882, 0
        %v899 = vsel %vm451, %v884, 0
        %v901 = vsel %vm451, %v886, 0
        %v903 = vsel %vm451, %v888, 0
        %905 = vmatprep.subr.mxu0 0.0
        %906 = vmatpush1.xpose.msra.mxu0 %v901
        %907 = vmatprep.subr.mxu0 0.0
        %908 = vmatpush1.xpose.msra.mxu0 %v903
        %909 = vmatprep.subr.mxu0 0.0
        %910 = vmatpush1.xpose.msra.mxu0 0.0
        %911 = vmatprep.subr.mxu0 0.0
        %912 = vmatpush1.xpose.msra.mxu0 0.0
        %913 = vmatprep.subr.mxu0 0.0
        %914 = vmatpush1.xpose.msra.mxu0 0.0
        %915 = vmatprep.subr.mxu0 0.0
        %916 = vmatpush1.xpose.msra.mxu0 0.0
        %917 = vmatprep.subr.mxu0 0.0
        %918 = vmatpush1.xpose.msra.mxu0 0.0
        %919 = vmatprep.subr.mxu0 0.0
        %920 = vmatpush1.xpose.msra.mxu0 0.0
        %921 = vmatprep.subr.mxu0 0.0
        %922 = vmatpush1.xpose.msra.mxu0 0.0
        %923 = vmatprep.subr.mxu0 0.0
        %924 = vmatpush1.xpose.msra.mxu0 0.0
        %925 = vmatprep.subr.mxu0 0.0
        %926 = vmatpush1.xpose.msra.mxu0 0.0
        %927 = vmatprep.subr.mxu0 0.0
        %928 = vmatpush1.xpose.msra.mxu0 0.0
        %929 = vmatprep.subr.mxu0 0.0
        %930 = vmatpush1.xpose.msra.mxu0 0.0
        %931 = vmatprep.subr.mxu0 0.0
        %932 = vmatpush1.xpose.msra.mxu0 0.0
        %933 = vmatprep.subr.mxu0 0.0
        %934 = vmatpush1.xpose.msra.mxu0 0.0
        %935 = vmatprep.subr.mxu0 0.0
        %936 = vmatpush1.xpose.msra.mxu0 0.0
        %937 = vmatprep.subr.mxu0 0.0
        %938 = vmatpush1.xpose.msra.mxu0 0.0
        %939 = vmatprep.subr.mxu0 0.0
        %940 = vmatpush1.xpose.msra.mxu0 0.0
        %941 = vmatprep.subr.mxu0 0.0
        %942 = vmatpush1.xpose.msra.mxu0 0.0
        %943 = vmatprep.subr.mxu0 0.0
        %944 = vmatpush1.xpose.msra.mxu0 0.0
        %945 = vmatprep.subr.mxu0 0.0
        %946 = vmatpush1.xpose.msra.mxu0 0.0
        %947 = vmatprep.subr.mxu0 0.0
        %948 = vmatpush1.xpose.msra.mxu0 0.0
        %949 = vmatprep.subr.mxu0 0.0
        %950 = vmatpush1.xpose.msra.mxu0 0.0
        %951 = vmatprep.subr.mxu0 0.0
        %952 = vmatpush1.xpose.msra.mxu0 0.0
        %953 = vmatprep.subr.mxu0 0.0
        %954 = vmatpush1.xpose.msra.mxu0 0.0
        %955 = vmatprep.subr.mxu0 0.0
        %956 = vmatpush1.xpose.msra.mxu0 0.0
        %957 = vmatprep.subr.mxu0 0.0
        %958 = vmatpush1.xpose.msra.mxu0 0.0
        %959 = vmatprep.subr.mxu0 0.0
        %960 = vmatpush1.xpose.msra.mxu0 0.0
        %961 = vmatprep.subr.mxu0 0.0
        %962 = vmatpush1.xpose.msra.mxu0 0.0
        %963 = vmatprep.subr.mxu0 0.0
        %964 = vmatpush1.xpose.msra.mxu0 0.0
        %965 = vmatprep.subr.mxu0 0.0
        %966 = vmatpush1.xpose.msra.mxu0 0.0
        %967 = vmatprep.subr.mxu0 0.0
        %968 = vmatpush1.xpose.msra.mxu0 0.0
        %969 = vmatprep.mubr.f32.mxu0 0.0
        %970 = vmatmul.mubr.f32.gmra.mrb[0].mxu0 %v897
        %v971 = vpop.f32.mrb[0].mxu0
        %v972 = vadd.f32 %v892, %v971
        %v973 = vpop.f32.mrb[0].mxu0
        %974 = vmatprep.mubr.f32.mxu0 0.0
        %975 = vmatmul.mubr.f32.gmra.mrb[0].mxu0 %v899
        %v976 = vpop.f32.mrb[0].mxu0
        %v977 = vadd.f32 %v894, %v976
        %v978 = vpop.f32.mrb[0].mxu0
        %979 = vdwg.mxu0
        %v980 = vmul.f32 %v972, 0.125
        %v981 = vmul.f32 %v977, 0.125
        %v982 = vsel %vm710, %v980, -inf
        %983 = vmax.xlane.f32.xlu0 %v982
        %v984 = vpop.xlane.xlu0 %983
        %v985 = vsel %vm710, %v981, -inf
        %986 = vmax.xlane.f32.xlu0 %v985
        %v987 = vpop.xlane.xlu0 %986
        %v988 = vsub.f32 %v980, %v984
        %v989 = vsub.f32 %v981, %v987
        %v990 = vmul.f32 %v988, 1.442695
        %v991 = vpow.pop %v990
        %v992 = vmul.f32 %v989, 1.442695
        %v993 = vpow.pop %v992
        %v994 = vsel %vm710, %v991, 0.0
        %995 = vadd.xlane.f32.xlu0 %v994
        %v996 = vpop.xlane.xlu0 %995
        %v997 = vsel %vm710, %v993, 0.0
        %998 = vadd.xlane.f32.xlu0 %v997
        %v999 = vpop.xlane.xlu0 %998
        %v1000 = vrcp.pop %v996
        %v1001 = vrcp.pop %v999
        %v1002 = vmul.f32 %v996, %v1000
        %v1003 = vmul.f32 %v999, %v1001
        %v1004 = vsub.f32 2.0, %v1002
        %v1005 = vsub.f32 2.0, %v1003
        %v1006 = vmul.f32 %v1000, %v1004
        %v1007 = vmul.f32 %v1001, %v1005
        %v1008 = vmul.f32 %v991, %v1006
        %v1009 = vmul.f32 %v993, %v1007
        %1012 = vrot.lane.b32.xlu0 %v437, 64
        %v1013 = vpop.permute.xlu0 %1012
        %1014 = vrot.lane.b32.xlu0 %v443, 64
        %v1015 = vpop.permute.xlu0 %1014
        %v1019 = vsel %vm710, %v1008, 0
        %v1022 = vsel %vm710, %v1009, 0
        %1024 = vmatprep.subr.mxu0 0.0
        %1025 = vmatpush1.msra.mxu0 %v1013
        %1026 = vmatprep.subr.mxu0 0.0
        %1027 = vmatpush1.msra.mxu0 %v1015
        %1028 = vmatprep.subr.mxu0 0.0
        %1029 = vmatpush1.msra.mxu0 0.0
        %1030 = vmatprep.subr.mxu0 0.0
        %1031 = vmatpush1.msra.mxu0 0.0
        %1032 = vmatprep.subr.mxu0 0.0
        %1033 = vmatpush1.msra.mxu0 0.0
        %1034 = vmatprep.subr.mxu0 0.0
        %1035 = vmatpush1.msra.mxu0 0.0
        %1036 = vmatprep.subr.mxu0 0.0
        %1037 = vmatpush1.msra.mxu0 0.0
        %1038 = vmatprep.subr.mxu0 0.0
        %1039 = vmatpush1.msra.mxu0 0.0
        %1040 = vmatprep.subr.mxu0 0.0
        %1041 = vmatpush1.msra.mxu0 0.0
        %1042 = vmatprep.subr.mxu0 0.0
        %1043 = vmatpush1.msra.mxu0 0.0
        %1044 = vmatprep.subr.mxu0 0.0
        %1045 = vmatpush1.msra.mxu0 0.0
        %1046 = vmatprep.subr.mxu0 0.0
        %1047 = vmatpush1.msra.mxu0 0.0
        %1048 = vmatprep.subr.mxu0 0.0
        %1049 = vmatpush1.msra.mxu0 0.0
        %1050 = vmatprep.subr.mxu0 0.0
        %1051 = vmatpush1.msra.mxu0 0.0
        %1052 = vmatprep.subr.mxu0 0.0
        %1053 = vmatpush1.msra.mxu0 0.0
        %1054 = vmatprep.subr.mxu0 0.0
        %1055 = vmatpush1.msra.mxu0 0.0
        %1056 = vmatprep.subr.mxu0 0.0
        %1057 = vmatpush1.msra.mxu0 0.0
        %1058 = vmatprep.subr.mxu0 0.0
        %1059 = vmatpush1.msra.mxu0 0.0
        %1060 = vmatprep.subr.mxu0 0.0
        %1061 = vmatpush1.msra.mxu0 0.0
        %1062 = vmatprep.subr.mxu0 0.0
        %1063 = vmatpush1.msra.mxu0 0.0
        %1064 = vmatprep.subr.mxu0 0.0
        %1065 = vmatpush1.msra.mxu0 0.0
        %1066 = vmatprep.subr.mxu0 0.0
        %1067 = vmatpush1.msra.mxu0 0.0
        %1068 = vmatprep.subr.mxu0 0.0
        %1069 = vmatpush1.msra.mxu0 0.0
        %1070 = vmatprep.subr.mxu0 0.0
        %1071 = vmatpush1.msra.mxu0 0.0
        %1072 = vmatprep.subr.mxu0 0.0
        %1073 = vmatpush1.msra.mxu0 0.0
        %1074 = vmatprep.subr.mxu0 0.0
        %1075 = vmatpush1.msra.mxu0 0.0
        %1076 = vmatprep.subr.mxu0 0.0
        %1077 = vmatpush1.msra.mxu0 0.0
        %1078 = vmatprep.subr.mxu0 0.0
        %1079 = vmatpush1.msra.mxu0 0.0
        %1080 = vmatprep.subr.mxu0 0.0
        %1081 = vmatpush1.msra.mxu0 0.0
        %1082 = vmatprep.subr.mxu0 0.0
        %1083 = vmatpush1.msra.mxu0 0.0
        %1084 = vmatprep.subr.mxu0 0.0
        %1085 = vmatpush1.msra.mxu0 0.0
        %1086 = vmatprep.subr.mxu0 0.0
        %1087 = vmatpush1.msra.mxu0 0.0
        %1088 = vmatprep.mubr.f32.mxu0 0.0
        %1089 = vmatmul.mubr.f32.gmra.mrb[0].mxu0 %v1019
        %v1090 = vpop.f32.mrb[0].mxu0
        %v1091 = vadd.f32 0.0, %v1090
        %v1092 = vpop.f32.mrb[0].mxu0
        %1093 = vmatprep.mubr.f32.mxu0 0.0
        %1094 = vmatmul.mubr.f32.gmra.mrb[0].mxu0 %v1022
        %v1095 = vpop.f32.mrb[0].mxu0
        %v1096 = vadd.f32 0.0, %v1095
        %v1097 = vpop.f32.mrb[0].mxu0
        %1098 = vdwg.mxu0
        %1101 = vrot.lane.b32.xlu0 %v1091, 64
        %v1102 = vpop.permute.xlu0 %1101
        %1103 = vrot.lane.b32.xlu0 %v1096, 64
        %v1104 = vpop.permute.xlu0 %1103
        %v1107 = vsel %vm451, %v812, %v1102
        %v1108 = vsel %vm451, %v817, %v1104
        %1109 = vst [vmem:[%s256] sm:$0xff] %v1107
        %1110 = vst [vmem:[%s256 + $0x8] sm:$0xff] %v1108
        %s1111 = sand.u32 %s118, 1
        %s1112 = scalar_lea.sflag [#allocation4], %s1111
        %s1113 = sand.u32 %s118, 1
        %s1114 = smul.addr %s1113, 16
        %s1115 = scalar_lea.vmem [#allocation8], %s1114
        // Predicated region
        $region45: #{tpu_custom_call.1} parent=31 // pred_check
          %p1116 = pneg %p128
        $region46: #{tpu_custom_call.1} parent=31 // pred_check_branch
          %1118 = sbr.rel (%p1116) target = $region48
        $region47: #{tpu_custom_call.1} parent=31 // pred_region
          %s1120 = ssub.s32 256, 256
          %1121 = vsyncadd %s1112, %s1120
          %s1122 = smul.addr %s27, 8
          %s1123 = sadd.s32 %s28, %s1122
          %s1124 = smul.addr %s1123, 128
          %s1125 = scalar_lea.hbm %s3, %s1124
          %s1126 = sshll.u32 %s1115, 4
          %s1127 = int_to_ptr.vmem [resolvable:$true] %s1126
          %1132 = dma.vmem_to_hbm [thread:$0]  %s1127, 256, %s1125, %s1112, 128, 512, 8
        $region48: #{tpu_custom_call.1} parent=31 // pred_fallthru
          _
      $region32: #{tpu_custom_call.1} parent=5 // pred_fallthru
        _
      %p1133 = scmp.le.s32.totalorder 2, %s18
      // Predicated region
      $region49: #{tpu_custom_call.1} parent=5 // pred_check
        %p1134 = pneg %p1133
      $region50: #{tpu_custom_call.1} parent=5 // pred_check_branch
        %1136 = sbr.rel (%p1134) target = $region52
      $region51: #{tpu_custom_call.1} parent=5 // pred_region
        %s1137 = ssub.s32 %s18, 2
        // Predicated region
        $region53: #{tpu_custom_call.1} parent=51 // pred_check
          %p1138 = pneg %p134
        $region54: #{tpu_custom_call.1} parent=51 // pred_check_branch
          %1140 = sbr.rel (%p1138) target = $region56
        $region55: #{tpu_custom_call.1} parent=51 // pred_region
          %s1141 = sand.u32 %s119, 1
          %s1142 = scalar_lea.sflag [#allocation4], %s1141
          %s1143 = sand.u32 %s119, 1
          %s1144 = smul.addr %s1143, 16
          %s1145 = scalar_lea.vmem [#allocation8], %s1144
          %1146 = dma.done %s1142, 256
        $region56: #{tpu_custom_call.1} parent=51 // pred_fallthru
          _
      $region52: #{tpu_custom_call.1} parent=5 // pred_fallthru
        _
    $region6: #{tpu_custom_call.1} parent=1 // loop_footer
      %s22 = sadd.s32 1, %s18
    $region7: #{tpu_custom_call.1} parent=1 // loop_footer_branch
      %17 = sbr.rel target = $region3
    $region8: #{tpu_custom_call.1} parent=1 // loop_exit
      _
    %1147 = vsyncpa [#allocation3], 1
    %s1148 = scalar_lea.sflag [#allocation3], 1
    %1149 = vsyncpa %s1148, 1
    %1150 = vsyncpa [#allocation6], 1
    %s1151 = scalar_lea.sflag [#allocation6], 1
    %1152 = vsyncpa %s1151, 1
    %1153 = vsyncpa [#allocation4], 1
    %s1154 = scalar_lea.sflag [#allocation4], 1
    %1155 = vsyncpa %s1154, 1

</llo_original>
